<compile_context>
chip_gen: v5e
topology: v5e:2x2
jax: 0.10.0
libtpu: 0.0.40
codegen_flags: <defaults>
</compile_context>

<pallas_src>
import numpy as np
import jax
import jax.numpy as jnp
from jax.experimental import pallas as pl
from jax.experimental.pallas import tpu as pltpu


_LANE = 128
_MAX_COLS = 1024                      # widest lane extent tried for the slab
_DEFAULT_BLOCK_BYTES = 2 * 1024 * 1024  # ~2 MiB blocks: v6e sweet spot, v7x-safe


def _copy_kernel(x_ref, o_ref):
    # Element-order-preserving copy: the only "compute" of a view.
    o_ref[...] = x_ref[...]


def _resolve_size(size, numel):
    """Resolve a PyTorch-style view size tuple (supports a single -1)."""
    size = tuple(int(s) for s in size)
    if -1 in size:
        known = 1
        for s in size:
            if s != -1:
                known *= s
        assert numel % known == 0, "view size not compatible with numel"
        size = tuple(numel // known if s == -1 else s for s in size)
    assert int(np.prod(size)) == numel, "view size must preserve numel"
    return size


def _copy_slab(slab, tile_rows, deep_buffering):
    rows, cols = slab.shape
    grid = (pl.cdiv(rows, tile_rows),)
    itemsize = jnp.dtype(slab.dtype).itemsize

    def build(use_deep):
        if use_deep:
            in_spec = pl.BlockSpec((tile_rows, cols), lambda i: (i, 0),
                                   pipeline_mode=pl.Buffered(3))
        else:
            in_spec = pl.BlockSpec((tile_rows, cols), lambda i: (i, 0))
        return pl.pallas_call(
            _copy_kernel,
            out_shape=jax.ShapeDtypeStruct((rows, cols), slab.dtype),
            grid_spec=pltpu.PrefetchScalarGridSpec(
                num_scalar_prefetch=0,
                grid=grid,
                in_specs=[in_spec],
                out_specs=pl.BlockSpec((tile_rows, cols), lambda i: (i, 0)),
            ),
            compiler_params=pltpu.CompilerParams(
                dimension_semantics=("parallel",),
            ),
            cost_estimate=pl.CostEstimate(
                flops=0,
                transcendentals=0,
                bytes_accessed=2 * rows * cols * itemsize),
        )

    if deep_buffering:
        try:
            return build(True)(slab)
        except Exception:  # fallback if Buffered pipeline_mode is unsupported
            pass
    return build(False)(slab)


def view_pallas(x, size, *, max_block_bytes=_DEFAULT_BLOCK_BYTES):
    """Equivalent of torch.Tensor.view(size), with the data path in Pallas."""
    numel = int(x.size)
    out_size = _resolve_size(size, numel)
    itemsize = jnp.dtype(x.dtype).itemsize

    # Flatten row-major (contiguous view semantics; metadata-only).
    flat = jnp.reshape(x, (-1,))

    # Rare fallback: numel not a multiple of 128 -> pad by < 128 elements.
    pad = (-numel) % _LANE
    if pad:
        # TODO(synk): slow path for tiny non-128-divisible tensors only; the
        # pad/slice costs one extra pass that the hot path never takes.
        flat = jnp.pad(flat, (0, pad))
    padded = numel + pad

    # Lane-dense slab: widest column count (multiple of 128) that factors the
    # length exactly, so no whole-array padding is needed on the hot path.
    cols = _LANE
    for c in (_MAX_COLS, 512, 256, _LANE):
        if padded % c == 0:
            cols = c
            break
    rows = padded // cols

    # Sublane tile scaled with dtype packing (8 rows f32, 16 bf16, 32 int8).
    pack = 8 * max(1, 4 // itemsize)
    rows_per_block = max(1, max_block_bytes // (cols * itemsize))
    if rows <= rows_per_block:
        tile_rows = rows  # single full-extent block (always a legal block dim)
    else:
        tile_rows = max(pack, (rows_per_block // pack) * pack)

    grid_len = pl.cdiv(rows, tile_rows)
    slab = jnp.reshape(flat, (rows, cols))
    out_slab = _copy_slab(slab, tile_rows, deep_buffering=grid_len >= 3)

    out_flat = jnp.reshape(out_slab, (-1,))
    if pad:
        out_flat = out_flat[:numel]
    return jnp.reshape(out_flat, out_size)


if __name__ == "__main__":
    key = jax.random.PRNGKey(0)
    k1, k2, k3 = jax.random.split(key, 3)

    # 1) Canonical "flatten NCHW feature map for an FC head" use of View.
    x = jax.random.normal(k1, (2, 4, 16, 16), dtype=jnp.float32)
    y = jax.block_until_ready(view_pallas(x, (2, -1)))
    y_ref = jnp.reshape(x, (2, -1))
    assert y.shape == (2, 4 * 16 * 16) and y.dtype == x.dtype
    np.testing.assert_array_equal(np.asarray(y), np.asarray(y_ref))

    # 2) Fallback path: numel not a multiple of 128 (tiny pad + slice).
    x2 = jax.random.normal(k2, (2, 3, 5, 7), dtype=jnp.float32)
    y2 = jax.block_until_ready(view_pallas(x2, (2, -1)))
    np.testing.assert_array_equal(
        np.asarray(y2), np.asarray(jnp.reshape(x2, (2, -1))))

    # 3) Multi-block grid + bf16 sublane packing (+ deep-buffering request),
    #    forced via a small max_block_bytes so the test tensor stays small.
    x3 = jax.random.normal(k3, (8, 16, 32, 32), dtype=jnp.bfloat16)
    y3 = jax.block_until_ready(
        view_pallas(x3, (8, -1), max_block_bytes=64 * 1024))
    assert y3.shape == (8, 16 * 32 * 32) and y3.dtype == x3.dtype
    assert bool(jnp.all(y3 == jnp.reshape(x3, (8, -1))))

    print("KERNEL_OK")
</pallas_src>

<mosaic_0001>
module attributes {stable_mosaic.version = 11 : i64} {
  func.func @_copy_kernel(%arg0: i32, %arg1: memref<2x1024xf32, #tpu.memory_space<vmem>>, %arg2: memref<2x1024xf32, #tpu.memory_space<vmem>>) attributes {dimension_semantics = [#tpu.dimension_semantics<parallel>], iteration_bounds = array<i64: 1>, scalar_prefetch = 0 : i64, scratch_operands = 0 : i64, tpu.core_type = #tpu.core_type<tc>, window_params = [{transform_indices = @transform_0, window_bounds = array<i64: 2, 1024>}, {transform_indices = @transform_1, window_bounds = array<i64: 2, 1024>}]} {
    %c0 = arith.constant 0 : index
    %c0_0 = arith.constant 0 : index
    %0 = vector.load %arg1[%c0, %c0_0] : memref<2x1024xf32, #tpu.memory_space<vmem>>, vector<2x1024xf32>
    %c0_1 = arith.constant 0 : index
    %c0_2 = arith.constant 0 : index
    %1 = vector.load %arg2[%c0_1, %c0_2] : memref<2x1024xf32, #tpu.memory_space<vmem>>, vector<2x1024xf32>
    tpu.vector_store %arg2[%c0_1, %c0_2], %0 {strides = array<i32>} : memref<2x1024xf32, #tpu.memory_space<vmem>>, vector<2x1024xf32>,
    return
  }
  func.func @transform_0(%arg0: i32) -> (i32, i32) {
    %c0_i32 = arith.constant 0 : i32
    %c0_i32_0 = arith.constant 0 : i32
    return %arg0, %c0_i32 : i32, i32
  }
  func.func @transform_1(%arg0: i32) -> (i32, i32) {
    %c0_i32 = arith.constant 0 : i32
    %c0_i32_0 = arith.constant 0 : i32
    return %arg0, %c0_i32 : i32, i32
  }
}

</mosaic_0001>

<llo_original>
// kernel: tpu_custom_call.1
$region0: #{tpu_custom_call.1}
  #allocation0 [shape = 'u32[]', space=smem, size = 0x4, offset = 0x4, fixed_abs, tag = 'smem constant byte address 0x4 - core index']
  #allocation1 [shape = 'u32[72,128]{1,0:T(1,128)}', space=vmem, size = 0x9000, scoped, tag = 'internal scratch']
  %s0 = inlined_call_operand.hbm [shape: f32[2,1024], index: 0, kind: input, shape index: {}]
  %s1 = inlined_call_operand.hbm [shape: f32[2,1024], index: 1, kind: output, shape index: {}]
  %s2 = sld [smem:[#allocation0]]
  $region18: #{tpu_custom_call.1} parent=0
    _
  %s4 = ssub.s32 1, %s2
  %s5 = scalar_select 0, %s4, %s2
  $region1: #{tpu_custom_call.1} parent=0
    #allocation2 [shape = 'u8[8192]{0}', space=vmem, size = 0x2000, scoped, tag = 'input window, operand 0, single buffered']
    #allocation3 [shape = 's32[1]{0}', space=sflag, size = 0x4, scoped, tag = 'scoped memory for tpu_custom_call.1']
    #allocation4 [shape = 's32[1]{0}', space=sflag, size = 0x4, scoped, tag = 'scoped memory for tpu_custom_call.1']
    #allocation5 [shape = 'u8[8192]{0}', space=vmem, size = 0x2000, scoped, tag = 'output window, operand 0, single buffered']
    %6 = vsyncpa [#allocation3], 0
    %7 = vsyncpa [#allocation4], 0
    // Predicated region
    $region2: #{tpu_custom_call.1} parent=1 // pred_check
      _
    $region3: #{tpu_custom_call.1} parent=1 // pred_check_branch
      %9 = sbr.rel (0) target = $region5
    $region4: #{tpu_custom_call.1} parent=1 // pred_region
      %11 = vsyncadd [#allocation3], 0
      %s13 = sshll.u32 %s0, 4
      %s14 = int_to_ptr.hbm [resolvable:$true] %s13
      %s15 = sshll.u32 [#allocation2], 4
      %s16 = int_to_ptr.vmem [resolvable:$true] %s15
      %18 = dma.hbm_to_vmem [thread:$0]  %s14, 256, %s16, [#allocation3]
    $region5: #{tpu_custom_call.1} parent=1 // pred_fallthru
      _
    // Predicated region
    $region6: #{tpu_custom_call.1} parent=1 // pred_check
      _
    $region7: #{tpu_custom_call.1} parent=1 // pred_check_branch
      %20 = sbr.rel (0) target = $region9
    $region8: #{tpu_custom_call.1} parent=1 // pred_region
      %22 = dma.done [#allocation3], 256
    $region9: #{tpu_custom_call.1} parent=1 // pred_fallthru
      _
    %v23 = vld [vmem:[#allocation2] sm:$0xff]
    %v24 = vld [vmem:[#allocation2 + $0x8] sm:$0xff]
    %25 = vst [vmem:[#allocation5] sm:$0xff] %v23
    %26 = vst [vmem:[#allocation5 + $0x8] sm:$0xff] %v24
    // Predicated region
    $region10: #{tpu_custom_call.1} parent=1 // pred_check
      _
    $region11: #{tpu_custom_call.1} parent=1 // pred_check_branch
      %28 = sbr.rel (0) target = $region13
    $region12: #{tpu_custom_call.1} parent=1 // pred_region
      %30 = vsyncadd [#allocation4], 0
      %s32 = sshll.u32 [#allocation5], 4
      %s33 = int_to_ptr.vmem [resolvable:$true] %s32
      %s34 = sshll.u32 %s1, 4
      %s35 = int_to_ptr.hbm [resolvable:$true] %s34
      %37 = dma.vmem_to_hbm [thread:$0]  %s33, 256, %s35, [#allocation4]
    $region13: #{tpu_custom_call.1} parent=1 // pred_fallthru
      _
    // Predicated region
    $region14: #{tpu_custom_call.1} parent=1 // pred_check
      _
    $region15: #{tpu_custom_call.1} parent=1 // pred_check_branch
      %39 = sbr.rel (0) target = $region17
    $region16: #{tpu_custom_call.1} parent=1 // pred_region
      %41 = dma.done [#allocation4], 256
    $region17: #{tpu_custom_call.1} parent=1 // pred_fallthru
      _
    %42 = vsyncpa [#allocation3], 1
    %43 = vsyncpa [#allocation4], 1

</llo_original>
